<compile_context>
chip_gen: v7x
topology: tpu7x:2x2x1
jax: 0.10.0
libtpu: 0.0.40
codegen_flags: <defaults>
</compile_context>

<pallas_src>
import functools

import jax
import jax.numpy as jnp
import numpy as np
from jax.experimental import pallas as pl
from jax.experimental.pallas import tpu as pltpu


# --------------------------- small helpers ----------------------------------


def _pair(v):
    if isinstance(v, (tuple, list)):
        return int(v[0]), int(v[1])
    return int(v), int(v)


def _round_up(x, m):
    return ((x + m - 1) // m) * m


def _selection_matrices(h, w, ho, wo, kh, kw, sh, sw, ph, pw):
    """0/1 pooling matrices over UNPADDED indices (zero padding folded in)."""
    hs = np.arange(h)[None, :]
    h0 = np.arange(ho)[:, None] * sh - ph
    pr = ((hs >= h0) & (hs < h0 + kh)).astype(np.float32)     # (Ho, H)
    ws = np.arange(w)[:, None]
    w0 = np.arange(wo)[None, :] * sw - pw
    pct = ((ws >= w0) & (ws < w0 + kw)).astype(np.float32)    # (W, Wo)
    return pr, pct


def _generation_budgets():
    """Returns (vmem_capacity, pipeline_budget_bytes, fused_balance flops/byte)."""
    vmem_cap = 128 * 1024 * 1024
    try:
        vmem_cap = int(getattr(pltpu.get_tpu_info(), "vmem_capacity_bytes",
                               vmem_cap))
    except Exception:
        pass
    if vmem_cap <= 64 * 1024 * 1024:
        # v7x-class: 64 MiB physical VMEM (32 MiB scoped default), 3.2 TB/s HBM.
        return vmem_cap, 24 * 1024 * 1024, 300.0
    # v5e / v6e: 128 MiB physical VMEM.  Use the conservative (v5e) roofline
    # balance so the fused path never turns MXU-bound on the weakest part.
    return vmem_cap, 48 * 1024 * 1024, 240.0


def _choose_plane_block(nc, per_plane_bytes, budget_bytes, itemsize,
                        need_sublane_mult):
    """Pick how many (N*C) planes each grid step processes.

    per_plane_bytes: double-buffered, both-parts in+out pipeline bytes/plane.
    need_sublane_mult: fused path => pblk is the block's second-minor dim and
      must be a sublane multiple (8 f32 / 16 bf16) unless it covers all of nc.
    """
    sub = max(8, 32 // max(int(itemsize), 1))
    cap = int(budget_bytes // max(per_plane_bytes, 1))
    if cap >= sub:
        cap = (cap // sub) * sub
    elif need_sublane_mult:
        cap = sub                       # fused planes are tiny; slight overshoot ok
    else:
        cap = max(cap, 1)
    if cap >= nc:
        # Whole problem fits one block.  Prefer two balanced steps so both v7x
        # TensorCores get work (harmless on single-TC v5e/v6e).
        if nc > sub:
            half = _round_up((nc + 1) // 2, sub)
            if half < nc:
                return half
        return nc
    pblk = cap
    steps = -(-nc // pblk)
    if steps > 1 and steps % 2 == 1:
        # Nudge to an even step count (v7x 2-TC balance) if it stays in budget.
        alt = _round_up(-(-nc // (steps + 1)), sub)
        if 0 < alt <= cap and (-(-nc // alt)) % 2 == 0:
            pblk = alt
    return pblk


# ------------------------------ kernels --------------------------------------


def _fused_kernel(s_ref, xr_ref, xi_ref, or_ref, oi_ref, *, inv_area):
    # s_ref : (H*W, Ho*Wo) combined 0/1 pooling matrix, input dtype
    # x*_ref: (Pblk, H*W)  lane-dense plane block (real / imag), native dtype
    # o*_ref: (Pblk, Ho*Wo)
    s = s_ref[...]
    for x_ref, o_ref in ((xr_ref, or_ref), (xi_ref, oi_ref)):
        y = jnp.dot(x_ref[...], s, preferred_element_type=jnp.float32)
        o_ref[...] = (y * inv_area).astype(o_ref.dtype)


def _separable_kernel(pct_ref, prt_ref, xr_ref, xi_ref, or_ref, oi_ref, *,
                      inv_area, pblk, h, w, ho, wo):
    # pct_ref: (W, Wo) column-window 0/1 matrix (native dtype)
    # prt_ref: (H, Ho) row-window 0/1 matrix, transposed (read as f32)
    # x*_ref : (Pblk, H, W),  o*_ref: (Pblk, Ho, Wo)
    pct = pct_ref[...]
    prt = prt_ref[...].astype(jnp.float32)
    for x_ref, o_ref in ((xr_ref, or_ref), (xi_ref, oi_ref)):
        x = x_ref[...]                                          # (P, H, W) native
        # W -> Wo as ONE flat 2-D MXU matmul (M = P*H keeps the MXU fed; no
        # broadcast of the pooling matrix, no per-plane micro-matmuls).
        rows = jnp.dot(x.reshape(pblk * h, w), pct,
                       preferred_element_type=jnp.float32)      # (P*H, Wo) f32
        rows = rows.reshape(pblk, h, wo)
        # H -> Ho on the already W-reduced tensor: minor-dims transpose (XLU,
        # otherwise idle in this kernel) + second flat matmul with M = P*Wo.
        rows_t = jnp.swapaxes(rows, 1, 2)                       # (P, Wo, H)
        y = jnp.dot(rows_t.reshape(pblk * wo, h), prt,
                    preferred_element_type=jnp.float32)         # (P*Wo, Ho)
        y = jnp.swapaxes(y.reshape(pblk, wo, ho), 1, 2)         # (P, Ho, Wo)
        o_ref[...] = (y * inv_area).astype(o_ref.dtype)


# ------------------------------ wrapper ---------------------------------------


def complex_avg_pool2d(input_r, input_i, kernel_size, stride=None, padding=0,
                       *, force_path=None, interpret=False):
    """Pallas equivalent of MSCVNets.complex_avg_pool2d (NCHW, torch defaults)."""
    kh, kw = _pair(kernel_size)
    sh, sw = _pair(stride) if stride is not None else (kh, kw)
    ph, pw = _pair(padding)

    assert input_r.shape == input_i.shape, "real/imag shapes must match"
    assert input_r.dtype == input_i.dtype, "real/imag dtypes must match"
    n, c, h, w = input_r.shape
    assert h + 2 * ph >= kh and w + 2 * pw >= kw, "pool window larger than input"
    dtype = input_r.dtype
    itemsize = jnp.dtype(dtype).itemsize
    assert jnp.issubdtype(dtype, jnp.floating) and itemsize <= 4, \
        "expect f32/bf16/f16 inputs on TPU"

    ho = (h + 2 * ph - kh) // sh + 1      # ceil_mode=False
    wo = (w + 2 * pw - kw) // sw + 1
    nc = n * c
    inv_area = 1.0 / float(kh * kw)       # count_include_pad=True divisor

    vmem_cap, budget, balance = _generation_budgets()

    # Fused single-matmul path while it stays HBM-bound (arithmetic intensity
    # of 2*Ho*Wo flops per input byte below the per-generation balance) and the
    # combined S matrix stays small in VMEM; otherwise separable two-matmul path.
    s_bytes = h * w * ho * wo * itemsize
    intensity = 2.0 * ho * wo / float(itemsize)
    use_fused = (intensity <= balance) and (2 * s_bytes <= 4 * 1024 * 1024)
    if force_path is not None:
        use_fused = (force_path == "fused")

    pr, pct = _selection_matrices(h, w, ho, wo, kh, kw, sh, sw, ph, pw)

    # Plane-block sizing against the double-buffered pipeline footprint.
    per_plane_bytes = 4 * (h * w + ho * wo) * itemsize   # 2 parts x 2 buffers
    const_bytes = s_bytes if use_fused else (h * ho + w * wo) * itemsize
    pblk = _choose_plane_block(
        nc, per_plane_bytes,
        max(budget - 2 * const_bytes, per_plane_bytes),
        itemsize, need_sublane_mult=use_fused)
    grid = (pl.cdiv(nc, pblk),)

    # VMEM limit follows the actual footprint (+ f32 temporaries + margin).
    temp_bytes = pblk * (ho * wo + (0 if use_fused else h * wo + wo * ho)) * 4
    footprint = pblk * per_plane_bytes + 2 * const_bytes + 2 * temp_bytes
    vmem_limit = int(min(max(footprint + (4 << 20), 16 << 20),
                         max(3 * vmem_cap // 4, 16 << 20)))

    cparams = pltpu.CompilerParams(
        dimension_semantics=("parallel",),
        vmem_limit_bytes=vmem_limit,
    )
    bytes_accessed = int(2 * nc * (h * w + ho * wo) * itemsize + 2 * const_bytes)

    if use_fused:
        # Combined pooling matrix S[(ih,iw),(oh,ow)] = Pr[oh,ih] * PcT[iw,ow],
        # built in the input dtype (0/1 values are exact in bf16/f16).
        s_np = (pr.T[:, None, :, None] * pct[None, :, None, :]
                ).reshape(h * w, ho * wo)
        s = jnp.asarray(s_np, dtype=dtype)
        xr = input_r.reshape(nc, h * w)     # free reshapes (row-major)
        xi = input_i.reshape(nc, h * w)
        flops = int(2 * 2 * nc * h * w * ho * wo)     # real+imag dense matmuls

        kernel = functools.partial(_fused_kernel, inv_area=inv_area)
        grid_spec = pltpu.PrefetchScalarGridSpec(
            num_scalar_prefetch=0, grid=grid,
            in_specs=[
                pl.BlockSpec((h * w, ho * wo), lambda i: (0, 0)),
                pl.BlockSpec((pblk, h * w), lambda i: (i, 0)),
                pl.BlockSpec((pblk, h * w), lambda i: (i, 0)),
            ],
            out_specs=[
                pl.BlockSpec((pblk, ho * wo), lambda i: (i, 0)),
                pl.BlockSpec((pblk, ho * wo), lambda i: (i, 0)),
            ],
        )
        out_shape = (jax.ShapeDtypeStruct((nc, ho * wo), dtype),
                     jax.ShapeDtypeStruct((nc, ho * wo), dtype))
        args = (s, xr, xi)
    else:
        pctj = jnp.asarray(pct, dtype=dtype)        # (W, Wo)
        prtj = jnp.asarray(pr.T, dtype=dtype)       # (H, Ho)
        xr = input_r.reshape(nc, h, w)
        xi = input_i.reshape(nc, h, w)
        flops = int(2 * 2 * nc * (h * w * wo + h * wo * ho))

        kernel = functools.partial(_separable_kernel, inv_area=inv_area,
                                   pblk=pblk, h=h, w=w, ho=ho, wo=wo)
        grid_spec = pltpu.PrefetchScalarGridSpec(
            num_scalar_prefetch=0, grid=grid,
            in_specs=[
                pl.BlockSpec((w, wo), lambda i: (0, 0)),
                pl.BlockSpec((h, ho), lambda i: (0, 0)),
                pl.BlockSpec((pblk, h, w), lambda i: (i, 0, 0)),
                pl.BlockSpec((pblk, h, w), lambda i: (i, 0, 0)),
            ],
            out_specs=[
                pl.BlockSpec((pblk, ho, wo), lambda i: (i, 0, 0)),
                pl.BlockSpec((pblk, ho, wo), lambda i: (i, 0, 0)),
            ],
        )
        out_shape = (jax.ShapeDtypeStruct((nc, ho, wo), dtype),
                     jax.ShapeDtypeStruct((nc, ho, wo), dtype))
        args = (pctj, prtj, xr, xi)

    cost = pl.CostEstimate(flops=flops, transcendentals=0,
                           bytes_accessed=bytes_accessed)
    out_r, out_i = pl.pallas_call(
        kernel, out_shape=out_shape, grid_spec=grid_spec,
        compiler_params=cparams, cost_estimate=cost, interpret=interpret,
    )(*args)
    return (out_r.reshape(n, c, ho, wo), out_i.reshape(n, c, ho, wo))


class ComplexAvgPool2d:
    """Parameter-free module mirroring MSCVNets.ComplexAvgPool2d."""

    def __init__(self, kernel_size, stride=None, padding=0):
        self.kernel_size = kernel_size
        self.stride = stride
        self.padding = padding

    def __call__(self, input_r, input_i):
        return complex_avg_pool2d(
            input_r, input_i,
            kernel_size=self.kernel_size,
            stride=self.stride,
            padding=self.padding)


# ------------------------------ self-test -------------------------------------


def _reference_avg_pool(x, kh, kw, sh, sw, ph, pw):
    # Pure-JAX reference (torch defaults: count_include_pad=True).
    xp = jnp.pad(x, ((0, 0), (0, 0), (ph, ph), (pw, pw)))
    summed = jax.lax.reduce_window(
        xp, 0.0, jax.lax.add,
        window_dimensions=(1, 1, kh, kw),
        window_strides=(1, 1, sh, sw),
        padding="VALID")
    return summed / float(kh * kw)


if __name__ == "__main__":
    key = jax.random.PRNGKey(0)
    kr, ki = jax.random.split(key)
    N, C, H, W = 2, 4, 16, 16
    x_r = jax.random.normal(kr, (N, C, H, W), dtype=jnp.float32)
    x_i = jax.random.normal(ki, (N, C, H, W), dtype=jnp.float32)

    # 1) Default config used by the module: stride = kernel_size, padding = 0.
    pool = ComplexAvgPool2d(kernel_size=2)
    out_r, out_i = pool(x_r, x_i)
    out_r = jax.block_until_ready(out_r)
    out_i = jax.block_until_ready(out_i)
    ref_r = _reference_avg_pool(x_r, 2, 2, 2, 2, 0, 0)
    ref_i = _reference_avg_pool(x_i, 2, 2, 2, 2, 0, 0)
    assert out_r.shape == (N, C, H // 2, W // 2)
    assert out_i.shape == (N, C, H // 2, W // 2)
    assert jnp.allclose(out_r, ref_r, atol=1e-5, rtol=1e-5)
    assert jnp.allclose(out_i, ref_i, atol=1e-5, rtol=1e-5)

    # 2) Strided + padded config (padding folded into the pooling matrices,
    #    count_include_pad=True semantics, no HBM-level jnp.pad).
    pool2 = ComplexAvgPool2d(kernel_size=3, stride=2, padding=1)
    out_r2, out_i2 = pool2(x_r, x_i)
    out_r2 = jax.block_until_ready(out_r2)
    out_i2 = jax.block_until_ready(out_i2)
    ref_r2 = _reference_avg_pool(x_r, 3, 3, 2, 2, 1, 1)
    ref_i2 = _reference_avg_pool(x_i, 3, 3, 2, 2, 1, 1)
    assert out_r2.shape == ref_r2.shape
    assert jnp.allclose(out_r2, ref_r2, atol=1e-5, rtol=1e-5)
    assert jnp.allclose(out_i2, ref_i2, atol=1e-5, rtol=1e-5)

    # 3) Separable fallback (selected automatically only for large spatial
    #    extents): semantics verified in Pallas interpret mode at small shapes
    #    so this smoke test stays fast and hardware-independent.
    y_r, y_i = complex_avg_pool2d(x_r, x_i, kernel_size=3, stride=2, padding=1,
                                  force_path="separable", interpret=True)
    y_r = jax.block_until_ready(y_r)
    y_i = jax.block_until_ready(y_i)
    assert jnp.allclose(y_r, ref_r2, atol=1e-5, rtol=1e-5)
    assert jnp.allclose(y_i, ref_i2, atol=1e-5, rtol=1e-5)

    print("KERNEL_OK")
</pallas_src>

<mosaic_0001>
module attributes {stable_mosaic.version = 11 : i64} {
  func.func @_fused_kernel(%arg0: i32, %arg1: memref<256x64xf32, #tpu.memory_space<vmem>>, %arg2: memref<8x256xf32, #tpu.memory_space<vmem>>, %arg3: memref<8x256xf32, #tpu.memory_space<vmem>>, %arg4: memref<8x64xf32, #tpu.memory_space<vmem>>, %arg5: memref<8x64xf32, #tpu.memory_space<vmem>>) attributes {dimension_semantics = [#tpu.dimension_semantics<parallel>], iteration_bounds = array<i64: 1>, scalar_prefetch = 0 : i64, scratch_operands = 0 : i64, tpu.core_type = #tpu.core_type<tc>, window_params = [{pipeline_mode = #tpu.pipeline_mode<synchronous>, transform_indices = @transform_0, window_bounds = array<i64: 256, 64>}, {transform_indices = @transform_1, window_bounds = array<i64: 8, 256>}, {transform_indices = @transform_2, window_bounds = array<i64: 8, 256>}, {transform_indices = @transform_3, window_bounds = array<i64: 8, 64>}, {transform_indices = @transform_4, window_bounds = array<i64: 8, 64>}]} {
    %c0 = arith.constant 0 : index
    %c0_0 = arith.constant 0 : index
    %0 = vector.load %arg1[%c0, %c0_0] : memref<256x64xf32, #tpu.memory_space<vmem>>, vector<256x64xf32>
    %c0_1 = arith.constant 0 : index
    %c0_2 = arith.constant 0 : index
    %1 = vector.load %arg2[%c0_1, %c0_2] : memref<8x256xf32, #tpu.memory_space<vmem>>, vector<8x256xf32>
    %cst = arith.constant dense<0.000000e+00> : vector<8x64xf32>
    %2 = tpu.matmul %1, %0, %cst {dimension_numbers = #tpu.dot_dimension_numbers<[1], [0], [0], [1], [0, 0, 1, 1], [], []>} : vector<8x256xf32>, vector<256x64xf32>, vector<8x64xf32> -> vector<8x64xf32>
    %cst_3 = arith.constant 2.500000e-01 : f32
    %3 = vector.broadcast %cst_3 : f32 to vector<8x64xf32>
    %4 = arith.mulf %2, %3 : vector<8x64xf32>
    %c0_4 = arith.constant 0 : index
    %c0_5 = arith.constant 0 : index
    %5 = vector.load %arg4[%c0_4, %c0_5] : memref<8x64xf32, #tpu.memory_space<vmem>>, vector<8x64xf32>
    tpu.vector_store %arg4[%c0_4, %c0_5], %4 {strides = array<i32>} : memref<8x64xf32, #tpu.memory_space<vmem>>, vector<8x64xf32>,
    %c0_6 = arith.constant 0 : index
    %c0_7 = arith.constant 0 : index
    %6 = vector.load %arg3[%c0_6, %c0_7] : memref<8x256xf32, #tpu.memory_space<vmem>>, vector<8x256xf32>
    %cst_8 = arith.constant dense<0.000000e+00> : vector<8x64xf32>
    %7 = tpu.matmul %6, %0, %cst_8 {dimension_numbers = #tpu.dot_dimension_numbers<[1], [0], [0], [1], [0, 0, 1, 1], [], []>} : vector<8x256xf32>, vector<256x64xf32>, vector<8x64xf32> -> vector<8x64xf32>
    %cst_9 = arith.constant 2.500000e-01 : f32
    %8 = vector.broadcast %cst_9 : f32 to vector<8x64xf32>
    %9 = arith.mulf %7, %8 : vector<8x64xf32>
    %c0_10 = arith.constant 0 : index
    %c0_11 = arith.constant 0 : index
    %10 = vector.load %arg5[%c0_10, %c0_11] : memref<8x64xf32, #tpu.memory_space<vmem>>, vector<8x64xf32>
    tpu.vector_store %arg5[%c0_10, %c0_11], %9 {strides = array<i32>} : memref<8x64xf32, #tpu.memory_space<vmem>>, vector<8x64xf32>,
    return
  }
  func.func @transform_0(%arg0: i32) -> (i32, i32) {
    %c0_i32 = arith.constant 0 : i32
    %c0_i32_0 = arith.constant 0 : i32
    %c0_i32_1 = arith.constant 0 : i32
    return %c0_i32, %c0_i32_0 : i32, i32
  }
  func.func @transform_1(%arg0: i32) -> (i32, i32) {
    %c0_i32 = arith.constant 0 : i32
    %c0_i32_0 = arith.constant 0 : i32
    return %arg0, %c0_i32 : i32, i32
  }
  func.func @transform_2(%arg0: i32) -> (i32, i32) {
    %c0_i32 = arith.constant 0 : i32
    %c0_i32_0 = arith.constant 0 : i32
    return %arg0, %c0_i32 : i32, i32
  }
  func.func @transform_3(%arg0: i32) -> (i32, i32) {
    %c0_i32 = arith.constant 0 : i32
    %c0_i32_0 = arith.constant 0 : i32
    return %arg0, %c0_i32 : i32, i32
  }
  func.func @transform_4(%arg0: i32) -> (i32, i32) {
    %c0_i32 = arith.constant 0 : i32
    %c0_i32_0 = arith.constant 0 : i32
    return %arg0, %c0_i32 : i32, i32
  }
}

</mosaic_0001>

<llo_original>
// kernel: tpu_custom_call.1
$region0: #{tpu_custom_call.1}
  #allocation0 [shape = 'u32[]', space=smem, size = 0x4, offset = 0x4, fixed_abs, tag = 'smem constant byte address 0x4 - core index']
  #allocation1 [shape = 'u32[144,128]{1,0:T(1,128)}', space=vmem, size = 0x12000, scoped, tag = 'internal scratch']
  %s0 = inlined_call_operand.vmem [shape: f32[256,64], index: 0, kind: input, shape index: {}]
  %s1 = inlined_call_operand.vmem [shape: f32[8,256], index: 1, kind: input, shape index: {}]
  %s2 = inlined_call_operand.vmem [shape: f32[8,256], index: 2, kind: input, shape index: {}]
  %s3 = inlined_call_operand.hbm [shape: f32[8,64], index: 3, kind: output, shape index: {0}]
  %s4 = inlined_call_operand.hbm [shape: f32[8,64], index: 4, kind: output, shape index: {1}]
  %5 = xla_tuple %s3, %s4
  %s6 = sld [smem:[#allocation0]]
  $region30: #{tpu_custom_call.1} parent=0
    _
  %s8 = ssub.s32 1, %s6
  %s9 = scalar_select 0, %s8, %s6
  $region1: #{tpu_custom_call.1} parent=0
    #allocation2 [shape = 'u8[4096]{0}', space=vmem, size = 0x1000, scoped, tag = 'output window, operand 0, single buffered']
    #allocation3 [shape = 's32[1]{0}', space=sflag, size = 0x4, scoped, tag = 'scoped memory for tpu_custom_call.1']
    #allocation4 [shape = 'u8[4096]{0}', space=vmem, size = 0x1000, scoped, tag = 'output window, operand 1, single buffered']
    #allocation5 [shape = 's32[1]{0}', space=sflag, size = 0x4, scoped, tag = 'scoped memory for tpu_custom_call.1']
    %10 = vsyncpa [#allocation3], 0
    %11 = vsyncpa [#allocation5], 0
    // Predicated region
    $region2: #{tpu_custom_call.1} parent=1 // pred_check
      _
    $region3: #{tpu_custom_call.1} parent=1 // pred_check_branch
      %13 = sbr.rel (0) target = $region5
    $region4: #{tpu_custom_call.1} parent=1 // pred_region
      _
    $region5: #{tpu_custom_call.1} parent=1 // pred_fallthru
      _
    // Predicated region
    $region6: #{tpu_custom_call.1} parent=1 // pred_check
      _
    $region7: #{tpu_custom_call.1} parent=1 // pred_check_branch
      %15 = sbr.rel (0) target = $region9
    $region8: #{tpu_custom_call.1} parent=1 // pred_region
      _
    $region9: #{tpu_custom_call.1} parent=1 // pred_fallthru
      _
    // Predicated region
    $region10: #{tpu_custom_call.1} parent=1 // pred_check
      _
    $region11: #{tpu_custom_call.1} parent=1 // pred_check_branch
      %17 = sbr.rel (0) target = $region13
    $region12: #{tpu_custom_call.1} parent=1 // pred_region
      _
    $region13: #{tpu_custom_call.1} parent=1 // pred_fallthru
      _
    %v18 = vld [vmem:[%s0] sm:$0xff]
    %v19 = vld [vmem:[%s0 + $0x8] sm:$0xff]
    %v20 = vld [vmem:[%s0 + $0x10] sm:$0xff]
    %v21 = vld [vmem:[%s0 + $0x18] sm:$0xff]
    %v22 = vld [vmem:[%s0 + $0x20] sm:$0xff]
    %v23 = vld [vmem:[%s0 + $0x28] sm:$0xff]
    %v24 = vld [vmem:[%s0 + $0x30] sm:$0xff]
    %v25 = vld [vmem:[%s0 + $0x38] sm:$0xff]
    %v26 = vld [vmem:[%s0 + $0x40] sm:$0xff]
    %v27 = vld [vmem:[%s0 + $0x48] sm:$0xff]
    %v28 = vld [vmem:[%s0 + $0x50] sm:$0xff]
    %v29 = vld [vmem:[%s0 + $0x58] sm:$0xff]
    %v30 = vld [vmem:[%s0 + $0x60] sm:$0xff]
    %v31 = vld [vmem:[%s0 + $0x68] sm:$0xff]
    %v32 = vld [vmem:[%s0 + $0x70] sm:$0xff]
    %v33 = vld [vmem:[%s0 + $0x78] sm:$0xff]
    %v34 = vld [vmem:[%s0 + $0x80] sm:$0xff]
    %v35 = vld [vmem:[%s0 + $0x88] sm:$0xff]
    %v36 = vld [vmem:[%s0 + $0x90] sm:$0xff]
    %v37 = vld [vmem:[%s0 + $0x98] sm:$0xff]
    %v38 = vld [vmem:[%s0 + $0xa0] sm:$0xff]
    %v39 = vld [vmem:[%s0 + $0xa8] sm:$0xff]
    %v40 = vld [vmem:[%s0 + $0xb0] sm:$0xff]
    %v41 = vld [vmem:[%s0 + $0xb8] sm:$0xff]
    %v42 = vld [vmem:[%s0 + $0xc0] sm:$0xff]
    %v43 = vld [vmem:[%s0 + $0xc8] sm:$0xff]
    %v44 = vld [vmem:[%s0 + $0xd0] sm:$0xff]
    %v45 = vld [vmem:[%s0 + $0xd8] sm:$0xff]
    %v46 = vld [vmem:[%s0 + $0xe0] sm:$0xff]
    %v47 = vld [vmem:[%s0 + $0xe8] sm:$0xff]
    %v48 = vld [vmem:[%s0 + $0xf0] sm:$0xff]
    %v49 = vld [vmem:[%s0 + $0xf8] sm:$0xff]
    %v50 = vld [vmem:[%s1] sm:$0xff]
    %v51 = vld [vmem:[%s1 + $0x8] sm:$0xff]
    %52 = vmatprep.subr.mxu0 0.0
    %53 = vmatpush1.msra.mxu0 %v18
    %54 = vmatprep.subr.mxu0 0.0
    %55 = vmatpush1.msra.mxu0 %v19
    %56 = vmatprep.subr.mxu0 0.0
    %57 = vmatpush1.msra.mxu0 %v20
    %58 = vmatprep.subr.mxu0 0.0
    %59 = vmatpush1.msra.mxu0 %v21
    %60 = vmatprep.subr.mxu0 0.0
    %61 = vmatpush1.msra.mxu0 %v22
    %62 = vmatprep.subr.mxu0 0.0
    %63 = vmatpush1.msra.mxu0 %v23
    %64 = vmatprep.subr.mxu0 0.0
    %65 = vmatpush1.msra.mxu0 %v24
    %66 = vmatprep.subr.mxu0 0.0
    %67 = vmatpush1.msra.mxu0 %v25
    %68 = vmatprep.subr.mxu0 0.0
    %69 = vmatpush1.msra.mxu0 %v26
    %70 = vmatprep.subr.mxu0 0.0
    %71 = vmatpush1.msra.mxu0 %v27
    %72 = vmatprep.subr.mxu0 0.0
    %73 = vmatpush1.msra.mxu0 %v28
    %74 = vmatprep.subr.mxu0 0.0
    %75 = vmatpush1.msra.mxu0 %v29
    %76 = vmatprep.subr.mxu0 0.0
    %77 = vmatpush1.msra.mxu0 %v30
    %78 = vmatprep.subr.mxu0 0.0
    %79 = vmatpush1.msra.mxu0 %v31
    %80 = vmatprep.subr.mxu0 0.0
    %81 = vmatpush1.msra.mxu0 %v32
    %82 = vmatprep.subr.mxu0 0.0
    %83 = vmatpush1.msra.mxu0 %v33
    %84 = vmatprep.subr.mxu0 0.0
    %85 = vmatpush1.msra.mxu0 %v34
    %86 = vmatprep.subr.mxu0 0.0
    %87 = vmatpush1.msra.mxu0 %v35
    %88 = vmatprep.subr.mxu0 0.0
    %89 = vmatpush1.msra.mxu0 %v36
    %90 = vmatprep.subr.mxu0 0.0
    %91 = vmatpush1.msra.mxu0 %v37
    %92 = vmatprep.subr.mxu0 0.0
    %93 = vmatpush1.msra.mxu0 %v38
    %94 = vmatprep.subr.mxu0 0.0
    %95 = vmatpush1.msra.mxu0 %v39
    %96 = vmatprep.subr.mxu0 0.0
    %97 = vmatpush1.msra.mxu0 %v40
    %98 = vmatprep.subr.mxu0 0.0
    %99 = vmatpush1.msra.mxu0 %v41
    %100 = vmatprep.subr.mxu0 0.0
    %101 = vmatpush1.msra.mxu0 %v42
    %102 = vmatprep.subr.mxu0 0.0
    %103 = vmatpush1.msra.mxu0 %v43
    %104 = vmatprep.subr.mxu0 0.0
    %105 = vmatpush1.msra.mxu0 %v44
    %106 = vmatprep.subr.mxu0 0.0
    %107 = vmatpush1.msra.mxu0 %v45
    %108 = vmatprep.subr.mxu0 0.0
    %109 = vmatpush1.msra.mxu0 %v46
    %110 = vmatprep.subr.mxu0 0.0
    %111 = vmatpush1.msra.mxu0 %v47
    %112 = vmatprep.subr.mxu0 0.0
    %113 = vmatpush1.msra.mxu0 %v48
    %114 = vmatprep.subr.mxu0 0.0
    %115 = vmatpush1.msra.mxu0 %v49
    %116 = vmatprep.mubr.f32.mxu0 %v51
    %117 = vmatmul.mubr.f32.gmra.mrb[0].mxu0 %v50
    %v118 = vpop.f32.mrb[0].mxu0
    %v119 = vadd.f32 0.0, %v118
    %v120 = vpop.f32.mrb[0].mxu0
    %121 = vdwg.mxu0
    %v122 = vmul.f32 %v119, 0.25
    %vm123 = vcmask 523264
    %124 = vst.msk [vmem:[#allocation2] sm:$0xff] %vm123, %v122
    %v125 = vld [vmem:[%s2] sm:$0xff]
    %v126 = vld [vmem:[%s2 + $0x8] sm:$0xff]
    %127 = vmatprep.subr.mxu0 0.0
    %128 = vmatpush1.msra.mxu0 %v18
    %129 = vmatprep.subr.mxu0 0.0
    %130 = vmatpush1.msra.mxu0 %v19
    %131 = vmatprep.subr.mxu0 0.0
    %132 = vmatpush1.msra.mxu0 %v20
    %133 = vmatprep.subr.mxu0 0.0
    %134 = vmatpush1.msra.mxu0 %v21
    %135 = vmatprep.subr.mxu0 0.0
    %136 = vmatpush1.msra.mxu0 %v22
    %137 = vmatprep.subr.mxu0 0.0
    %138 = vmatpush1.msra.mxu0 %v23
    %139 = vmatprep.subr.mxu0 0.0
    %140 = vmatpush1.msra.mxu0 %v24
    %141 = vmatprep.subr.mxu0 0.0
    %142 = vmatpush1.msra.mxu0 %v25
    %143 = vmatprep.subr.mxu0 0.0
    %144 = vmatpush1.msra.mxu0 %v26
    %145 = vmatprep.subr.mxu0 0.0
    %146 = vmatpush1.msra.mxu0 %v27
    %147 = vmatprep.subr.mxu0 0.0
    %148 = vmatpush1.msra.mxu0 %v28
    %149 = vmatprep.subr.mxu0 0.0
    %150 = vmatpush1.msra.mxu0 %v29
    %151 = vmatprep.subr.mxu0 0.0
    %152 = vmatpush1.msra.mxu0 %v30
    %153 = vmatprep.subr.mxu0 0.0
    %154 = vmatpush1.msra.mxu0 %v31
    %155 = vmatprep.subr.mxu0 0.0
    %156 = vmatpush1.msra.mxu0 %v32
    %157 = vmatprep.subr.mxu0 0.0
    %158 = vmatpush1.msra.mxu0 %v33
    %159 = vmatprep.subr.mxu0 0.0
    %160 = vmatpush1.msra.mxu0 %v34
    %161 = vmatprep.subr.mxu0 0.0
    %162 = vmatpush1.msra.mxu0 %v35
    %163 = vmatprep.subr.mxu0 0.0
    %164 = vmatpush1.msra.mxu0 %v36
    %165 = vmatprep.subr.mxu0 0.0
    %166 = vmatpush1.msra.mxu0 %v37
    %167 = vmatprep.subr.mxu0 0.0
    %168 = vmatpush1.msra.mxu0 %v38
    %169 = vmatprep.subr.mxu0 0.0
    %170 = vmatpush1.msra.mxu0 %v39
    %171 = vmatprep.subr.mxu0 0.0
    %172 = vmatpush1.msra.mxu0 %v40
    %173 = vmatprep.subr.mxu0 0.0
    %174 = vmatpush1.msra.mxu0 %v41
    %175 = vmatprep.subr.mxu0 0.0
    %176 = vmatpush1.msra.mxu0 %v42
    %177 = vmatprep.subr.mxu0 0.0
    %178 = vmatpush1.msra.mxu0 %v43
    %179 = vmatprep.subr.mxu0 0.0
    %180 = vmatpush1.msra.mxu0 %v44
    %181 = vmatprep.subr.mxu0 0.0
    %182 = vmatpush1.msra.mxu0 %v45
    %183 = vmatprep.subr.mxu0 0.0
    %184 = vmatpush1.msra.mxu0 %v46
    %185 = vmatprep.subr.mxu0 0.0
    %186 = vmatpush1.msra.mxu0 %v47
    %187 = vmatprep.subr.mxu0 0.0
    %188 = vmatpush1.msra.mxu0 %v48
    %189 = vmatprep.subr.mxu0 0.0
    %190 = vmatpush1.msra.mxu0 %v49
    %191 = vmatprep.mubr.f32.mxu0 %v126
    %192 = vmatmul.mubr.f32.gmra.mrb[0].mxu0 %v125
    %v193 = vpop.f32.mrb[0].mxu0
    %v194 = vadd.f32 0.0, %v193
    %v195 = vpop.f32.mrb[0].mxu0
    %196 = vdwg.mxu0
    %v197 = vmul.f32 %v194, 0.25
    %198 = vst.msk [vmem:[#allocation4] sm:$0xff] %vm123, %v197
    // Predicated region
    $region14: #{tpu_custom_call.1} parent=1 // pred_check
      _
    $region15: #{tpu_custom_call.1} parent=1 // pred_check_branch
      %200 = sbr.rel (0) target = $region17
    $region16: #{tpu_custom_call.1} parent=1 // pred_region
      %s202 = ssub.s32 128, 128
      %203 = vsyncadd [#allocation3], %s202
      %s205 = sshll.u32 [#allocation2], 4
      %s206 = int_to_ptr.vmem [resolvable:$true] %s205
      %208 = dma.vmem_to_hbm [thread:$0]  %s206, 128, %s3, [#allocation3]
    $region17: #{tpu_custom_call.1} parent=1 // pred_fallthru
      _
    // Predicated region
    $region18: #{tpu_custom_call.1} parent=1 // pred_check
      _
    $region19: #{tpu_custom_call.1} parent=1 // pred_check_branch
      %210 = sbr.rel (0) target = $region21
    $region20: #{tpu_custom_call.1} parent=1 // pred_region
      %s212 = ssub.s32 128, 128
      %213 = vsyncadd [#allocation5], %s212
      %s215 = sshll.u32 [#allocation4], 4
      %s216 = int_to_ptr.vmem [resolvable:$true] %s215
      %218 = dma.vmem_to_hbm [thread:$0]  %s216, 128, %s4, [#allocation5]
    $region21: #{tpu_custom_call.1} parent=1 // pred_fallthru
      _
    // Predicated region
    $region22: #{tpu_custom_call.1} parent=1 // pred_check
      _
    $region23: #{tpu_custom_call.1} parent=1 // pred_check_branch
      %220 = sbr.rel (0) target = $region25
    $region24: #{tpu_custom_call.1} parent=1 // pred_region
      %221 = dma.done [#allocation3], 128
    $region25: #{tpu_custom_call.1} parent=1 // pred_fallthru
      _
    // Predicated region
    $region26: #{tpu_custom_call.1} parent=1 // pred_check
      _
    $region27: #{tpu_custom_call.1} parent=1 // pred_check_branch
      %223 = sbr.rel (0) target = $region29
    $region28: #{tpu_custom_call.1} parent=1 // pred_region
      %224 = dma.done [#allocation5], 128
    $region29: #{tpu_custom_call.1} parent=1 // pred_fallthru
      _
    %225 = vsyncpa [#allocation3], 1
    %226 = vsyncpa [#allocation5], 1

</llo_original>
